<compile_context>
chip_gen: v6e
topology: v6e:2x2x1
jax: 0.10.0
libtpu: 0.0.40
codegen_flags: <defaults>
</compile_context>

<pallas_src>
import jax
import jax.numpy as jnp
from jax.experimental import pallas as pl
from jax.experimental.pallas import tpu as pltpu

EPS = 1e-5
N_BLOCKS = 5


def _bn_fold(x, gamma, beta):
    """Training-mode BatchNorm1d folded to a per-channel affine: x_norm = x*a + b.

    One-pass statistics (var = E[x^2] - mu^2, clamped at 0) so x is swept once;
    gamma/beta/mu/rstd are folded so the per-element path is one fma.
    """
    mu = jnp.mean(x, axis=0, keepdims=True)
    var = jnp.maximum(jnp.mean(x * x, axis=0, keepdims=True) - mu * mu, 0.0)
    a = gamma * jax.lax.rsqrt(var + EPS)
    b = beta - mu * a
    return a, b


def decoder_kernel(xin_ref, w_in_ref, gvecs_ref, blk_w_ref, blk_v_ref,
                   wo_ref, bo_ref, out_ref):
    gvecs = gvecs_ref[...]                       # (3, H): [b_in, gamma_f, beta_f]
    b_in, gf, bf = gvecs[0:1], gvecs[1:2], gvecs[2:3]

    # Fused fc_p + fc_z + fc_c: one MXU pass over the concatenated input slab.
    x = jnp.dot(xin_ref[...], w_in_ref[...],
                preferred_element_type=jnp.float32) + b_in        # (N, H)

    # 5 x ResnetBlockConv1d; identity shortcut (size_in == size_out == H).
    def block(i, x):
        wv = blk_w_ref[i]                        # (2, H, H): [fc_0, fc_1] weights
        pv = blk_v_ref[i]                        # (6, H): g0, be0, b0, g1, be1, b1
        a0, c0 = _bn_fold(x, pv[0:1], pv[1:2])
        h = jnp.dot(jnp.maximum(x * a0 + c0, 0.0), wv[0],
                    preferred_element_type=jnp.float32) + pv[2:3]
        a1, c1 = _bn_fold(h, pv[3:4], pv[4:5])
        dx = jnp.dot(jnp.maximum(h * a1 + c1, 0.0), wv[1],
                     preferred_element_type=jnp.float32) + pv[5:6]
        return x + dx

    x = jax.lax.fori_loop(0, N_BLOCKS, block, x)

    # Final BN + ReLU + fc_out.  Computed transposed so the store is a
    # lane-dense (1, N) slab instead of a masked (N, 1) column.
    af, cf = _bn_fold(x, gf, bf)
    act = jnp.maximum(x * af + cf, 0.0)                            # (N, H)
    y = jax.lax.dot_general(wo_ref[...], act,
                            dimension_numbers=(((1,), (1,)), ((), ())),
                            preferred_element_type=jnp.float32)    # (1, N)
    out_ref[...] = y + bo_ref[...]


def decoder_batchnorm(p, z, c, params):
    """p: (B, T, D), z: (B, Z), c: (B, C)  ->  (B, T)."""
    B, T, D = p.shape
    N = B * T
    H = params["wp"].shape[1]

    # ---- wrapper-side layout plumbing (no compute hoisted) -------------------
    # Fuse the three input projections: concat inputs along channels, stack the
    # weights, and collapse the per-channel biases into one vector.
    xin = jnp.concatenate(
        [p.reshape(N, D), jnp.repeat(z, T, axis=0), jnp.repeat(c, T, axis=0)],
        axis=1)                                                    # (N, D+Z+C)
    w_in = jnp.concatenate([params["wp"], params["wz"], params["wc"]], axis=0)
    K = xin.shape[1]
    KP = ((K + 7) // 8) * 8                      # pad contraction dim to sublanes
    if KP != K:
        xin = jnp.pad(xin, ((0, 0), (0, KP - K)))
        w_in = jnp.pad(w_in, ((0, KP - K), (0, 0)))
    b_in = params["bp"] + params["bz"] + params["bc"]              # (1, H)

    # Consolidate the many tiny per-channel vectors into a few stacked arrays.
    gvecs = jnp.concatenate([b_in, params["gf"], params["bf"]], axis=0)  # (3, H)
    blk_w = jnp.stack([params["w0"], params["w1"]], axis=1)        # (5, 2, H, H)
    blk_v = jnp.concatenate(
        [params["g0"], params["be0"], params["b0"],
         params["g1"], params["be1"], params["b1"]], axis=1)       # (5, 6, H)
    wo_t = params["wo"].T                                          # (1, H)
    bo = params["bo"]                                              # (1, 1)

    args = (xin, w_in, gvecs, blk_w, blk_v, wo_t, bo)
    footprint = sum(int(a.size) * a.dtype.itemsize for a in args) + 4 * N
    # operands + a handful of (N, H) f32 activation slabs + headroom
    vmem_limit = int(min(96 * 2**20,
                         max(4 * 2**20, 2 * footprint + 8 * N * H * 4)))

    vmem = pl.BlockSpec(memory_space=pltpu.MemorySpace.VMEM)
    out_flat = pl.pallas_call(
        decoder_kernel,
        out_shape=jax.ShapeDtypeStruct((1, N), jnp.float32),
        in_specs=[vmem] * len(args),
        out_specs=vmem,
        compiler_params=pltpu.CompilerParams(vmem_limit_bytes=vmem_limit),
    )(*args)
    return out_flat.reshape(B, T)


def init_params(key, dim, z_dim, c_dim, hidden):
    ks = jax.random.split(key, 18)
    rnd = lambda k, shape, s=0.1: s * jax.random.normal(k, shape, dtype=jnp.float32)
    H = hidden
    # NOTE: weights stored transposed (in, out) so the kernel computes x @ W.
    # TODO(synk): PyTorch's ResnetBlockConv1d zero-inits fc_1.weight; we use
    # small random values here to exercise the full compute path.
    return dict(
        wp=rnd(ks[0], (dim, H)),    bp=rnd(ks[1], (1, H)),
        wz=rnd(ks[2], (z_dim, H)),  bz=rnd(ks[3], (1, H)),
        wc=rnd(ks[4], (c_dim, H)),  bc=rnd(ks[5], (1, H)),
        w0=rnd(ks[6], (N_BLOCKS, H, H)),  b0=rnd(ks[7], (N_BLOCKS, 1, H)),
        w1=rnd(ks[8], (N_BLOCKS, H, H)),  b1=rnd(ks[9], (N_BLOCKS, 1, H)),
        g0=1.0 + rnd(ks[10], (N_BLOCKS, 1, H)), be0=rnd(ks[11], (N_BLOCKS, 1, H)),
        g1=1.0 + rnd(ks[12], (N_BLOCKS, 1, H)), be1=rnd(ks[13], (N_BLOCKS, 1, H)),
        gf=1.0 + rnd(ks[14], (1, H)),           bf=rnd(ks[15], (1, H)),
        wo=rnd(ks[16], (H, 1)),                 bo=rnd(ks[17], (1, 1)),
    )


def decoder_reference(p, z, c, params):
    """Pure-JAX reference (two-pass BN), used only as a numerical sanity check."""
    B, T, D = p.shape
    N = B * T
    hp = jax.lax.Precision.HIGHEST

    def bn_relu(x, gamma, beta):
        mu = jnp.mean(x, axis=0, keepdims=True)
        var = jnp.mean((x - mu) ** 2, axis=0, keepdims=True)
        return jnp.maximum((x - mu) / jnp.sqrt(var + EPS) * gamma + beta, 0.0)

    x = (jnp.dot(p.reshape(N, D), params["wp"], precision=hp) + params["bp"]
         + jnp.repeat(jnp.dot(z, params["wz"], precision=hp) + params["bz"], T, axis=0)
         + jnp.repeat(jnp.dot(c, params["wc"], precision=hp) + params["bc"], T, axis=0))
    for i in range(N_BLOCKS):
        h = jnp.dot(bn_relu(x, params["g0"][i], params["be0"][i]),
                    params["w0"][i], precision=hp) + params["b0"][i]
        dx = jnp.dot(bn_relu(h, params["g1"][i], params["be1"][i]),
                     params["w1"][i], precision=hp) + params["b1"][i]
        x = x + dx
    y = jnp.dot(bn_relu(x, params["gf"], params["bf"]),
                params["wo"], precision=hp) + params["bo"]
    return y.reshape(B, T)


if __name__ == "__main__":
    B, T, D, Z, C, H = 2, 64, 3, 8, 8, 128
    key = jax.random.PRNGKey(0)
    kp, kz, kc, kw = jax.random.split(key, 4)
    p = jax.random.normal(kp, (B, T, D), dtype=jnp.float32)
    z = jax.random.normal(kz, (B, Z), dtype=jnp.float32)
    c = jax.random.normal(kc, (B, C), dtype=jnp.float32)
    params = init_params(kw, D, Z, C, H)

    out = decoder_batchnorm(p, z, c, params)
    jax.block_until_ready(out)
    assert out.shape == (B, T) and out.dtype == jnp.float32

    # Loose-tolerance structural sanity check against a pure-JAX reference
    # (MXU multi-pass f32 vs HIGHEST-precision XLA matmuls differ slightly).
    ref = decoder_reference(p, z, c, params)
    assert bool(jnp.allclose(out, ref, atol=5e-2, rtol=5e-2)), float(
        jnp.max(jnp.abs(out - ref)))

    print("KERNEL_OK")
</pallas_src>

<mosaic_0001>
module attributes {stable_mosaic.version = 11 : i64} {
  func.func @decoder_kernel(%arg0: memref<128x24xf32, #tpu.memory_space<vmem>>, %arg1: memref<24x128xf32, #tpu.memory_space<vmem>>, %arg2: memref<3x128xf32, #tpu.memory_space<vmem>>, %arg3: memref<5x2x128x128xf32, #tpu.memory_space<vmem>>, %arg4: memref<5x6x128xf32, #tpu.memory_space<vmem>>, %arg5: memref<1x128xf32, #tpu.memory_space<vmem>>, %arg6: memref<1x1xf32, #tpu.memory_space<vmem>>, %arg7: memref<1x128xf32, #tpu.memory_space<vmem>>) attributes {dimension_semantics = [], scalar_prefetch = 0 : i64, scratch_operands = 0 : i64, tpu.core_type = #tpu.core_type<tc>} {
    %c0 = arith.constant 0 : index
    %c0_0 = arith.constant 0 : index
    %0 = vector.load %arg2[%c0, %c0_0] : memref<3x128xf32, #tpu.memory_space<vmem>>, vector<3x128xf32>
    %1 = vector.extract_strided_slice %0 {offsets = [0, 0], sizes = [1, 128], strides = [1, 1]} : vector<3x128xf32> to vector<1x128xf32>
    %2 = vector.extract_strided_slice %0 {offsets = [1, 0], sizes = [1, 128], strides = [1, 1]} : vector<3x128xf32> to vector<1x128xf32>
    %3 = vector.extract_strided_slice %0 {offsets = [2, 0], sizes = [1, 128], strides = [1, 1]} : vector<3x128xf32> to vector<1x128xf32>
    %c0_1 = arith.constant 0 : index
    %c0_2 = arith.constant 0 : index
    %4 = vector.load %arg0[%c0_1, %c0_2] : memref<128x24xf32, #tpu.memory_space<vmem>>, vector<128x24xf32>
    %c0_3 = arith.constant 0 : index
    %c0_4 = arith.constant 0 : index
    %5 = vector.load %arg1[%c0_3, %c0_4] : memref<24x128xf32, #tpu.memory_space<vmem>>, vector<24x128xf32>
    %cst = arith.constant dense<0.000000e+00> : vector<128x128xf32>
    %6 = tpu.matmul %4, %5, %cst {dimension_numbers = #tpu.dot_dimension_numbers<[1], [0], [0], [1], [0, 0, 1, 1], [], []>} : vector<128x24xf32>, vector<24x128xf32>, vector<128x128xf32> -> vector<128x128xf32>
    %7 = vector.broadcast %1 : vector<1x128xf32> to vector<128x128xf32>
    %8 = arith.addf %6, %7 : vector<128x128xf32>
    %c0_i32 = arith.constant 0 : i32
    %c5_i32 = arith.constant 5 : i32
    %9 = arith.addi %c0_i32, %c5_i32 : i32
    %c1_i32 = arith.constant 1 : i32
    %10 = scf.for %arg8 = %c0_i32 to %9 step %c1_i32 iter_args(%arg9 = %8) -> (vector<128x128xf32>)  : i32 {
      %42 = arith.index_cast %arg8 : i32 to index
      %c0_20 = arith.constant 0 : index
      %c0_21 = arith.constant 0 : index
      %c0_22 = arith.constant 0 : index
      %43 = vector.load %arg3[%42, %c0_20, %c0_21, %c0_22] : memref<5x2x128x128xf32, #tpu.memory_space<vmem>>, vector<1x2x128x128xf32>
      %44 = vector.shape_cast %43 : vector<1x2x128x128xf32> to vector<2x128x128xf32>
      %45 = arith.index_cast %arg8 : i32 to index
      %c0_23 = arith.constant 0 : index
      %c0_24 = arith.constant 0 : index
      %46 = vector.load %arg4[%45, %c0_23, %c0_24] : memref<5x6x128xf32, #tpu.memory_space<vmem>>, vector<1x6x128xf32>
      %47 = vector.shape_cast %46 : vector<1x6x128xf32> to vector<6x128xf32>
      %48 = vector.extract_strided_slice %47 {offsets = [0, 0], sizes = [1, 128], strides = [1, 1]} : vector<6x128xf32> to vector<1x128xf32>
      %49 = vector.extract_strided_slice %47 {offsets = [1, 0], sizes = [1, 128], strides = [1, 1]} : vector<6x128xf32> to vector<1x128xf32>
      %cst_25 = arith.constant dense<0.000000e+00> : vector<128xf32>
      %50 = vector.multi_reduction <add>, %arg9, %cst_25 [0] : vector<128x128xf32> to vector<128xf32>
      %51 = vector.shape_cast %50 : vector<128xf32> to vector<1x128xf32>
      %cst_26 = arith.constant 1.280000e+02 : f32
      %52 = vector.broadcast %cst_26 : f32 to vector<1x128xf32>
      %53 = arith.divf %51, %52 : vector<1x128xf32>
      %54 = arith.mulf %arg9, %arg9 : vector<128x128xf32>
      %cst_27 = arith.constant dense<0.000000e+00> : vector<128xf32>
      %55 = vector.multi_reduction <add>, %54, %cst_27 [0] : vector<128x128xf32> to vector<128xf32>
      %56 = vector.shape_cast %55 : vector<128xf32> to vector<1x128xf32>
      %cst_28 = arith.constant 1.280000e+02 : f32
      %57 = vector.broadcast %cst_28 : f32 to vector<1x128xf32>
      %58 = arith.divf %56, %57 : vector<1x128xf32>
      %59 = arith.mulf %53, %53 : vector<1x128xf32>
      %60 = arith.subf %58, %59 : vector<1x128xf32>
      %cst_29 = arith.constant 0.000000e+00 : f32
      %61 = vector.broadcast %cst_29 : f32 to vector<1x128xf32>
      %62 = arith.maximumf %60, %61 : vector<1x128xf32>
      %cst_30 = arith.constant 9.99999974E-6 : f32
      %63 = vector.broadcast %cst_30 : f32 to vector<1x128xf32>
      %64 = arith.addf %62, %63 : vector<1x128xf32>
      %65 = math.rsqrt %64 : vector<1x128xf32>
      %66 = arith.mulf %48, %65 : vector<1x128xf32>
      %67 = arith.mulf %53, %66 : vector<1x128xf32>
      %68 = arith.subf %49, %67 : vector<1x128xf32>
      %69 = vector.broadcast %66 : vector<1x128xf32> to vector<128x128xf32>
      %70 = arith.mulf %arg9, %69 : vector<128x128xf32>
      %71 = vector.broadcast %68 : vector<1x128xf32> to vector<128x128xf32>
      %72 = arith.addf %70, %71 : vector<128x128xf32>
      %cst_31 = arith.constant 0.000000e+00 : f32
      %73 = vector.broadcast %cst_31 : f32 to vector<128x128xf32>
      %74 = arith.maximumf %72, %73 : vector<128x128xf32>
      %75 = vector.extract_strided_slice %44 {offsets = [0, 0, 0], sizes = [1, 128, 128], strides = [1, 1, 1]} : vector<2x128x128xf32> to vector<1x128x128xf32>
      %76 = vector.shape_cast %75 : vector<1x128x128xf32> to vector<128x128xf32>
      %cst_32 = arith.constant dense<0.000000e+00> : vector<128x128xf32>
      %77 = tpu.matmul %74, %76, %cst_32 {dimension_numbers = #tpu.dot_dimension_numbers<[1], [0], [0], [1], [0, 0, 1, 1], [], []>} : vector<128x128xf32>, vector<128x128xf32>, vector<128x128xf32> -> vector<128x128xf32>
      %78 = vector.extract_strided_slice %47 {offsets = [2, 0], sizes = [1, 128], strides = [1, 1]} : vector<6x128xf32> to vector<1x128xf32>
      %79 = vector.broadcast %78 : vector<1x128xf32> to vector<128x128xf32>
      %80 = arith.addf %77, %79 : vector<128x128xf32>
      %81 = vector.extract_strided_slice %47 {offsets = [3, 0], sizes = [1, 128], strides = [1, 1]} : vector<6x128xf32> to vector<1x128xf32>
      %82 = vector.extract_strided_slice %47 {offsets = [4, 0], sizes = [1, 128], strides = [1, 1]} : vector<6x128xf32> to vector<1x128xf32>
      %cst_33 = arith.constant dense<0.000000e+00> : vector<128xf32>
      %83 = vector.multi_reduction <add>, %80, %cst_33 [0] : vector<128x128xf32> to vector<128xf32>
      %84 = vector.shape_cast %83 : vector<128xf32> to vector<1x128xf32>
      %cst_34 = arith.constant 1.280000e+02 : f32
      %85 = vector.broadcast %cst_34 : f32 to vector<1x128xf32>
      %86 = arith.divf %84, %85 : vector<1x128xf32>
      %87 = arith.mulf %80, %80 : vector<128x128xf32>
      %cst_35 = arith.constant dense<0.000000e+00> : vector<128xf32>
      %88 = vector.multi_reduction <add>, %87, %cst_35 [0] : vector<128x128xf32> to vector<128xf32>
      %89 = vector.shape_cast %88 : vector<128xf32> to vector<1x128xf32>
      %cst_36 = arith.constant 1.280000e+02 : f32
      %90 = vector.broadcast %cst_36 : f32 to vector<1x128xf32>
      %91 = arith.divf %89, %90 : vector<1x128xf32>
      %92 = arith.mulf %86, %86 : vector<1x128xf32>
      %93 = arith.subf %91, %92 : vector<1x128xf32>
      %cst_37 = arith.constant 0.000000e+00 : f32
      %94 = vector.broadcast %cst_37 : f32 to vector<1x128xf32>
      %95 = arith.maximumf %93, %94 : vector<1x128xf32>
      %cst_38 = arith.constant 9.99999974E-6 : f32
      %96 = vector.broadcast %cst_38 : f32 to vector<1x128xf32>
      %97 = arith.addf %95, %96 : vector<1x128xf32>
      %98 = math.rsqrt %97 : vector<1x128xf32>
      %99 = arith.mulf %81, %98 : vector<1x128xf32>
      %100 = arith.mulf %86, %99 : vector<1x128xf32>
      %101 = arith.subf %82, %100 : vector<1x128xf32>
      %102 = vector.broadcast %99 : vector<1x128xf32> to vector<128x128xf32>
      %103 = arith.mulf %80, %102 : vector<128x128xf32>
      %104 = vector.broadcast %101 : vector<1x128xf32> to vector<128x128xf32>
      %105 = arith.addf %103, %104 : vector<128x128xf32>
      %cst_39 = arith.constant 0.000000e+00 : f32
      %106 = vector.broadcast %cst_39 : f32 to vector<128x128xf32>
      %107 = arith.maximumf %105, %106 : vector<128x128xf32>
      %108 = vector.extract_strided_slice %44 {offsets = [1, 0, 0], sizes = [1, 128, 128], strides = [1, 1, 1]} : vector<2x128x128xf32> to vector<1x128x128xf32>
      %109 = vector.shape_cast %108 : vector<1x128x128xf32> to vector<128x128xf32>
      %cst_40 = arith.constant dense<0.000000e+00> : vector<128x128xf32>
      %110 = tpu.matmul %107, %109, %cst_40 {dimension_numbers = #tpu.dot_dimension_numbers<[1], [0], [0], [1], [0, 0, 1, 1], [], []>} : vector<128x128xf32>, vector<128x128xf32>, vector<128x128xf32> -> vector<128x128xf32>
      %111 = vector.extract_strided_slice %47 {offsets = [5, 0], sizes = [1, 128], strides = [1, 1]} : vector<6x128xf32> to vector<1x128xf32>
      %112 = vector.broadcast %111 : vector<1x128xf32> to vector<128x128xf32>
      %113 = arith.addf %110, %112 : vector<128x128xf32>
      %114 = arith.addf %arg9, %113 : vector<128x128xf32>
      scf.yield %114 : vector<128x128xf32>
    }
    %c5_i32_5 = arith.constant 5 : i32
    %cst_6 = arith.constant dense<0.000000e+00> : vector<128xf32>
    %11 = vector.multi_reduction <add>, %10, %cst_6 [0] : vector<128x128xf32> to vector<128xf32>
    %12 = vector.shape_cast %11 : vector<128xf32> to vector<1x128xf32>
    %cst_7 = arith.constant 1.280000e+02 : f32
    %13 = vector.broadcast %cst_7 : f32 to vector<1x128xf32>
    %14 = arith.divf %12, %13 : vector<1x128xf32>
    %15 = arith.mulf %10, %10 : vector<128x128xf32>
    %cst_8 = arith.constant dense<0.000000e+00> : vector<128xf32>
    %16 = vector.multi_reduction <add>, %15, %cst_8 [0] : vector<128x128xf32> to vector<128xf32>
    %17 = vector.shape_cast %16 : vector<128xf32> to vector<1x128xf32>
    %cst_9 = arith.constant 1.280000e+02 : f32
    %18 = vector.broadcast %cst_9 : f32 to vector<1x128xf32>
    %19 = arith.divf %17, %18 : vector<1x128xf32>
    %20 = arith.mulf %14, %14 : vector<1x128xf32>
    %21 = arith.subf %19, %20 : vector<1x128xf32>
    %cst_10 = arith.constant 0.000000e+00 : f32
    %22 = vector.broadcast %cst_10 : f32 to vector<1x128xf32>
    %23 = arith.maximumf %21, %22 : vector<1x128xf32>
    %cst_11 = arith.constant 9.99999974E-6 : f32
    %24 = vector.broadcast %cst_11 : f32 to vector<1x128xf32>
    %25 = arith.addf %23, %24 : vector<1x128xf32>
    %26 = math.rsqrt %25 : vector<1x128xf32>
    %27 = arith.mulf %2, %26 : vector<1x128xf32>
    %28 = arith.mulf %14, %27 : vector<1x128xf32>
    %29 = arith.subf %3, %28 : vector<1x128xf32>
    %30 = vector.broadcast %27 : vector<1x128xf32> to vector<128x128xf32>
    %31 = arith.mulf %10, %30 : vector<128x128xf32>
    %32 = vector.broadcast %29 : vector<1x128xf32> to vector<128x128xf32>
    %33 = arith.addf %31, %32 : vector<128x128xf32>
    %cst_12 = arith.constant 0.000000e+00 : f32
    %34 = vector.broadcast %cst_12 : f32 to vector<128x128xf32>
    %35 = arith.maximumf %33, %34 : vector<128x128xf32>
    %c0_13 = arith.constant 0 : index
    %c0_14 = arith.constant 0 : index
    %36 = vector.load %arg5[%c0_13, %c0_14] : memref<1x128xf32, #tpu.memory_space<vmem>>, vector<1x128xf32>
    %cst_15 = arith.constant dense<0.000000e+00> : vector<1x128xf32>
    %37 = tpu.matmul %36, %35, %cst_15 {dimension_numbers = #tpu.dot_dimension_numbers<[1], [1], [0], [0], [0, 0, 1, 0], [], []>} : vector<1x128xf32>, vector<128x128xf32>, vector<1x128xf32> -> vector<1x128xf32>
    %c0_16 = arith.constant 0 : index
    %c0_17 = arith.constant 0 : index
    %38 = vector.load %arg6[%c0_16, %c0_17] : memref<1x1xf32, #tpu.memory_space<vmem>>, vector<1x1xf32>
    %39 = vector.broadcast %38 : vector<1x1xf32> to vector<1x128xf32>
    %40 = arith.addf %37, %39 : vector<1x128xf32>
    %c0_18 = arith.constant 0 : index
    %c0_19 = arith.constant 0 : index
    %41 = vector.load %arg7[%c0_18, %c0_19] : memref<1x128xf32, #tpu.memory_space<vmem>>, vector<1x128xf32>
    tpu.vector_store %arg7[%c0_18, %c0_19], %40 {strides = array<i32>} : memref<1x128xf32, #tpu.memory_space<vmem>>, vector<1x128xf32>,
    return
  }
}

</mosaic_0001>

<llo_original>
// kernel: tpu_custom_call.1
$region0: #{tpu_custom_call.1}
  #allocation0 [shape = 'u32[]', space=smem, size = 0x4, offset = 0x4, fixed_abs, tag = 'smem constant byte address 0x4 - core index']
  #allocation1 [shape = 'u32[144,128]{1,0:T(1,128)}', space=vmem, size = 0x12000, scoped, tag = 'internal scratch']
  #allocation2 [shape = 'f32[1,1]{1,0:T(1,128)S(1)}', space=vmem, size = 0x200, scoped, tag = 'scoped memory for tpu_custom_call.1']
  %s0 = inlined_call_operand.vmem [shape: f32[128,24], index: 0, kind: input, shape index: {}]
  %s1 = inlined_call_operand.vmem [shape: f32[24,128], index: 1, kind: input, shape index: {}]
  %s2 = inlined_call_operand.vmem [shape: f32[3,128], index: 2, kind: input, shape index: {}]
  %s3 = inlined_call_operand.hbm [shape: f32[5,2,128,128], index: 3, kind: input, shape index: {}]
  %s4 = inlined_call_operand.vmem [shape: f32[5,6,128], index: 4, kind: input, shape index: {}]
  %s5 = inlined_call_operand.vmem [shape: f32[1,128], index: 5, kind: input, shape index: {}]
  %s6 = inlined_call_operand.<no memory space> [shape: f32[1,1], index: 6, kind: input, shape index: {}]
  %s7 = inlined_call_operand.hbm [shape: f32[1,128], index: 7, kind: output, shape index: {}]
  %s8 = sld [smem:[#allocation0]]
  $region49: #{tpu_custom_call.1} parent=0
    _
  %s10 = ssub.s32 1, %s8
  %s11 = scalar_select 0, %s10, %s8
  %v12 = vstv %s6
  %13 = vst [vmem:[#allocation2] sm:$0x1] %v12
  $region1: #{tpu_custom_call.1} parent=0
    #allocation3 [shape = 'u8[655360]{0}', space=vmem, size = 0xa0000, scoped, tag = 'input window, operand 3, single buffered']
    #allocation4 [shape = 's32[1]{0}', space=sflag, size = 0x4, scoped, tag = 'scoped memory for tpu_custom_call.1']
    #allocation5 [shape = 's32[1]{0}', space=sflag, size = 0x4, scoped, tag = 'scoped memory for tpu_custom_call.1']
    #allocation6 [shape = 'u8[512]{0}', space=vmem, size = 0x400, scoped, tag = 'output window, operand 0, single buffered']
    %14 = vsyncpa [#allocation4], 0
    %15 = vsyncpa [#allocation5], 0
    // Predicated region
    $region2: #{tpu_custom_call.1} parent=1 // pred_check
      _
    $region3: #{tpu_custom_call.1} parent=1 // pred_check_branch
      %17 = sbr.rel (0) target = $region5
    $region4: #{tpu_custom_call.1} parent=1 // pred_region
      _
    $region5: #{tpu_custom_call.1} parent=1 // pred_fallthru
      _
    // Predicated region
    $region6: #{tpu_custom_call.1} parent=1 // pred_check
      _
    $region7: #{tpu_custom_call.1} parent=1 // pred_check_branch
      %19 = sbr.rel (0) target = $region9
    $region8: #{tpu_custom_call.1} parent=1 // pred_region
      _
    $region9: #{tpu_custom_call.1} parent=1 // pred_fallthru
      _
    // Predicated region
    $region10: #{tpu_custom_call.1} parent=1 // pred_check
      _
    $region11: #{tpu_custom_call.1} parent=1 // pred_check_branch
      %21 = sbr.rel (0) target = $region13
    $region12: #{tpu_custom_call.1} parent=1 // pred_region
      _
    $region13: #{tpu_custom_call.1} parent=1 // pred_fallthru
      _
    // Predicated region
    $region14: #{tpu_custom_call.1} parent=1 // pred_check
      _
    $region15: #{tpu_custom_call.1} parent=1 // pred_check_branch
      %23 = sbr.rel (0) target = $region17
    $region16: #{tpu_custom_call.1} parent=1 // pred_region
      %s25 = ssub.s32 20480, 20480
      %26 = vsyncadd [#allocation4], %s25
      %s27 = sshll.u32 [#allocation3], 4
      %s28 = int_to_ptr.vmem [resolvable:$true] %s27
      %33 = dma.hbm_to_vmem [thread:$0]  %s3, 20480, %s28, [#allocation4], 128, 128, 8
    $region17: #{tpu_custom_call.1} parent=1 // pred_fallthru
      _
    // Predicated region
    $region18: #{tpu_custom_call.1} parent=1 // pred_check
      _
    $region19: #{tpu_custom_call.1} parent=1 // pred_check_branch
      %35 = sbr.rel (0) target = $region21
    $region20: #{tpu_custom_call.1} parent=1 // pred_region
      _
    $region21: #{tpu_custom_call.1} parent=1 // pred_fallthru
      _
    // Predicated region
    $region22: #{tpu_custom_call.1} parent=1 // pred_check
      _
    $region23: #{tpu_custom_call.1} parent=1 // pred_check_branch
      %37 = sbr.rel (0) target = $region25
    $region24: #{tpu_custom_call.1} parent=1 // pred_region
      _
    $region25: #{tpu_custom_call.1} parent=1 // pred_fallthru
      _
    // Predicated region
    $region26: #{tpu_custom_call.1} parent=1 // pred_check
      _
    $region27: #{tpu_custom_call.1} parent=1 // pred_check_branch
      %39 = sbr.rel (0) target = $region29
    $region28: #{tpu_custom_call.1} parent=1 // pred_region
      _
    $region29: #{tpu_custom_call.1} parent=1 // pred_fallthru
      _
    // Predicated region
    $region30: #{tpu_custom_call.1} parent=1 // pred_check
      _
    $region31: #{tpu_custom_call.1} parent=1 // pred_check_branch
      %41 = sbr.rel (0) target = $region33
    $region32: #{tpu_custom_call.1} parent=1 // pred_region
      %42 = dma.done [#allocation4], 20480
    $region33: #{tpu_custom_call.1} parent=1 // pred_fallthru
      _
    %v43 = vld [vmem:[%s2] sm:$0x7]
    %v44 = vld [vmem:[%s0] sm:$0xff]
    %v45 = vld [vmem:[%s0 + $0x8] sm:$0xff]
    %v46 = vld [vmem:[%s0 + $0x10] sm:$0xff]
    %v47 = vld [vmem:[%s0 + $0x18] sm:$0xff]
    %v48 = vld [vmem:[%s0 + $0x20] sm:$0xff]
    %v49 = vld [vmem:[%s0 + $0x28] sm:$0xff]
    %v50 = vld [vmem:[%s0 + $0x30] sm:$0xff]
    %v51 = vld [vmem:[%s0 + $0x38] sm:$0xff]
    %v52 = vld [vmem:[%s0 + $0x40] sm:$0xff]
    %v53 = vld [vmem:[%s0 + $0x48] sm:$0xff]
    %v54 = vld [vmem:[%s0 + $0x50] sm:$0xff]
    %v55 = vld [vmem:[%s0 + $0x58] sm:$0xff]
    %v56 = vld [vmem:[%s0 + $0x60] sm:$0xff]
    %v57 = vld [vmem:[%s0 + $0x68] sm:$0xff]
    %v58 = vld [vmem:[%s0 + $0x70] sm:$0xff]
    %v59 = vld [vmem:[%s0 + $0x78] sm:$0xff]
    %v60 = vld [vmem:[%s1] sm:$0xff]
    %v61 = vld [vmem:[%s1 + $0x8] sm:$0xff]
    %v62 = vld [vmem:[%s1 + $0x10] sm:$0xff]
    %v63 = vlaneseq
    %v64 = vshrl.u32 %v63, 7
    %v65 = vsub.s32 0, %v64
    %v66 = vrot.slane %v43, %v65
    %vm67 = vcmask 195584
    %v69 = vsel %vm67, %v44, 0
    %v72 = vsel %vm67, %v45, 0
    %v75 = vsel %vm67, %v46, 0
    %v78 = vsel %vm67, %v47, 0
    %v81 = vsel %vm67, %v48, 0
    %v84 = vsel %vm67, %v49, 0
    %v87 = vsel %vm67, %v50, 0
    %v90 = vsel %vm67, %v51, 0
    %v93 = vsel %vm67, %v52, 0
    %v96 = vsel %vm67, %v53, 0
    %v99 = vsel %vm67, %v54, 0
    %v102 = vsel %vm67, %v55, 0
    %v105 = vsel %vm67, %v56, 0
    %v108 = vsel %vm67, %v57, 0
    %v111 = vsel %vm67, %v58, 0
    %v114 = vsel %vm67, %v59, 0
    %116 = vmatprep.subr.mxu0 0.0
    %117 = vmatpush1.msra.mxu0 0.0
    %118 = vmatprep.subr.mxu0 0.0
    %119 = vmatpush1.msra.mxu0 0.0
    %120 = vmatprep.subr.mxu0 0.0
    %121 = vmatpush1.msra.mxu0 0.0
    %122 = vmatprep.subr.mxu0 0.0
    %123 = vmatpush1.msra.mxu0 0.0
    %124 = vmatprep.subr.mxu0 0.0
    %125 = vmatpush1.msra.mxu0 0.0
    %126 = vmatprep.subr.mxu0 0.0
    %127 = vmatpush1.msra.mxu0 0.0
    %128 = vmatprep.subr.mxu0 0.0
    %129 = vmatpush1.msra.mxu0 0.0
    %130 = vmatprep.subr.mxu0 0.0
    %131 = vmatpush1.msra.mxu0 0.0
    %132 = vmatprep.subr.mxu0 0.0
    %133 = vmatpush1.msra.mxu0 0.0
    %134 = vmatprep.subr.mxu0 0.0
    %135 = vmatpush1.msra.mxu0 0.0
    %136 = vmatprep.subr.mxu0 0.0
    %137 = vmatpush1.msra.mxu0 0.0
    %138 = vmatprep.subr.mxu0 0.0
    %139 = vmatpush1.msra.mxu0 0.0
    %140 = vmatprep.subr.mxu0 0.0
    %141 = vmatpush1.msra.mxu0 0.0
    %142 = vmatprep.subr.mxu0 0.0
    %143 = vmatpush1.msra.mxu0 %v62
    %144 = vmatprep.subr.mxu0 0.0
    %145 = vmatpush1.msra.mxu0 %v61
    %146 = vmatprep.subr.mxu0 0.0
    %147 = vmatpush1.msra.mxu0 %v60
    %148 = vmatprep.subr.mxu0 0.0
    %149 = vmatpush2.msra.mxu0 0.0
    %150 = vmatprep.subr.mxu0 0.0
    %151 = vmatpush2.msra.mxu0 0.0
    %152 = vmatprep.subr.mxu0 0.0
    %153 = vmatpush2.msra.mxu0 0.0
    %154 = vmatprep.subr.mxu0 0.0
    %155 = vmatpush2.msra.mxu0 0.0
    %156 = vmatprep.subr.mxu0 0.0
    %157 = vmatpush2.msra.mxu0 0.0
    %158 = vmatprep.subr.mxu0 0.0
    %159 = vmatpush2.msra.mxu0 0.0
    %160 = vmatprep.subr.mxu0 0.0
    %161 = vmatpush2.msra.mxu0 0.0
    %162 = vmatprep.subr.mxu0 0.0
    %163 = vmatpush2.msra.mxu0 0.0
    %164 = vmatprep.subr.mxu0 0.0
    %165 = vmatpush2.msra.mxu0 0.0
    %166 = vmatprep.subr.mxu0 0.0
    %167 = vmatpush2.msra.mxu0 0.0
    %168 = vmatprep.subr.mxu0 0.0
    %169 = vmatpush2.msra.mxu0 0.0
    %170 = vmatprep.subr.mxu0 0.0
    %171 = vmatpush2.msra.mxu0 0.0
    %172 = vmatprep.subr.mxu0 0.0
    %173 = vmatpush2.msra.mxu0 0.0
    %174 = vmatprep.subr.mxu0 0.0
    %175 = vmatpush2.msra.mxu0 0.0
    %176 = vmatprep.subr.mxu0 0.0
    %177 = vmatpush2.msra.mxu0 0.0
    %178 = vmatprep.subr.mxu0 0.0
    %179 = vmatpush2.msra.mxu0 0.0
    %180 = vmatprep.mubr.f32.mxu0 0.0
    %181 = vmatmul.mubr.f32.gmra.mxu0 %v69
    %v182 = vpop.f32.mrf.mxu0
    %v183 = vadd.f32 %v66, %v182
    %v184 = vpop.f32.mrf.mxu0
    %185 = vmatprep.mubr.f32.mxu0 0.0
    %186 = vmatmul.mubr.f32.gmra.mxu0 %v72
    %v187 = vpop.f32.mrf.mxu0
    %v188 = vadd.f32 %v66, %v187
    %v189 = vpop.f32.mrf.mxu0
    %190 = vmatprep.mubr.f32.mxu0 0.0
    %191 = vmatmul.mubr.f32.gmra.mxu0 %v75
    %v192 = vpop.f32.mrf.mxu0
    %v193 = vadd.f32 %v66, %v192
    %v194 = vpop.f32.mrf.mxu0
    %195 = vmatprep.mubr.f32.mxu0 0.0
    %196 = vmatmul.mubr.f32.gmra.mxu0 %v78
    %v197 = vpop.f32.mrf.mxu0
    %v198 = vadd.f32 %v66, %v197
    %v199 = vpop.f32.mrf.mxu0
    %200 = vmatprep.mubr.f32.mxu0 0.0
    %201 = vmatmul.mubr.f32.gmra.mxu0 %v81
    %v202 = vpop.f32.mrf.mxu0
    %v203 = vadd.f32 %v66, %v202
    %v204 = vpop.f32.mrf.mxu0
    %205 = vmatprep.mubr.f32.mxu0 0.0
    %206 = vmatmul.mubr.f32.gmra.mxu0 %v84
    %v207 = vpop.f32.mrf.mxu0
    %v208 = vadd.f32 %v66, %v207
    %v209 = vpop.f32.mrf.mxu0
    %210 = vmatprep.mubr.f32.mxu0 0.0
    %211 = vmatmul.mubr.f32.gmra.mxu0 %v87
    %v212 = vpop.f32.mrf.mxu0
    %v213 = vadd.f32 %v66, %v212
    %v214 = vpop.f32.mrf.mxu0
    %215 = vmatprep.mubr.f32.mxu0 0.0
    %216 = vmatmul.mubr.f32.gmra.mxu0 %v90
    %v217 = vpop.f32.mrf.mxu0
    %v218 = vadd.f32 %v66, %v217
    %v219 = vpop.f32.mrf.mxu0
    %220 = vmatprep.mubr.f32.mxu0 0.0
    %221 = vmatmul.mubr.f32.gmra.mxu0 %v93
    %v222 = vpop.f32.mrf.mxu0
    %v223 = vadd.f32 %v66, %v222
    %v224 = vpop.f32.mrf.mxu0
    %225 = vmatprep.mubr.f32.mxu0 0.0
    %226 = vmatmul.mubr.f32.gmra.mxu0 %v96
    %v227 = vpop.f32.mrf.mxu0
    %v228 = vadd.f32 %v66, %v227
    %v229 = vpop.f32.mrf.mxu0
    %230 = vmatprep.mubr.f32.mxu0 0.0
    %231 = vmatmul.mubr.f32.gmra.mxu0 %v99
    %v232 = vpop.f32.mrf.mxu0
    %v233 = vadd.f32 %v66, %v232
    %v234 = vpop.f32.mrf.mxu0
    %235 = vmatprep.mubr.f32.mxu0 0.0
    %236 = vmatmul.mubr.f32.gmra.mxu0 %v102
    %v237 = vpop.f32.mrf.mxu0
    %v238 = vadd.f32 %v66, %v237
    %v239 = vpop.f32.mrf.mxu0
    %240 = vmatprep.mubr.f32.mxu0 0.0
    %241 = vmatmul.mubr.f32.gmra.mxu0 %v105
    %v242 = vpop.f32.mrf.mxu0
    %v243 = vadd.f32 %v66, %v242
    %v244 = vpop.f32.mrf.mxu0
    %245 = vmatprep.mubr.f32.mxu0 0.0
    %246 = vmatmul.mubr.f32.gmra.mxu0 %v108
    %v247 = vpop.f32.mrf.mxu0
    %v248 = vadd.f32 %v66, %v247
    %v249 = vpop.f32.mrf.mxu0
    %250 = vmatprep.mubr.f32.mxu0 0.0
    %251 = vmatmul.mubr.f32.gmra.mxu0 %v111
    %v252 = vpop.f32.mrf.mxu0
    %v253 = vadd.f32 %v66, %v252
    %v254 = vpop.f32.mrf.mxu0
    %255 = vmatprep.mubr.f32.mxu0 0.0
    %256 = vmatmul.mubr.f32.gmra.mxu0 %v114
    %v257 = vpop.f32.mrf.mxu0
    %v258 = vadd.f32 %v66, %v257
    %v259 = vpop.f32.mrf.mxu0
    %260 = vdwg.mxu0
    loop: start=0, step=1, limit=5
    $region34: #{tpu_custom_call.1} parent=1 // loop_pre_header
      _
    $region35: #{tpu_custom_call.1} parent=1 // loop_header
      %s262 = sphi 0, %s266
      %p263 = scmp.ge.s32.totalorder %s262, 5
      %v267 = vphi %v183, %v873
      %v268 = vphi %v188, %v874
      %v269 = vphi %v193, %v875
      %v270 = vphi %v198, %v876
      %v271 = vphi %v203, %v877
      %v272 = vphi %v208, %v878
      %v273 = vphi %v213, %v879
      %v274 = vphi %v218, %v880
      %v275 = vphi %v223, %v881
      %v276 = vphi %v228, %v882
      %v277 = vphi %v233, %v883
      %v278 = vphi %v238, %v884
      %v279 = vphi %v243, %v885
      %v280 = vphi %v248, %v886
      %v281 = vphi %v253, %v887
      %v282 = vphi %v258, %v888
    $region36: #{tpu_custom_call.1} parent=1 // loop_header_branch
      %265 = sbr.rel (%p263) target = $region40
    $region37: #{tpu_custom_call.1} parent=1 // loop_body
      %s283 = smul.u32 %s262, 256
      %s284 = scalar_lea.vmem [#allocation3], %s283
      %v285 = vld [vmem:[%s284] sm:$0xff]
      %v286 = vld [vmem:[%s284 + $0x8] sm:$0xff]
      %v287 = vld [vmem:[%s284 + $0x10] sm:$0xff]
      %v288 = vld [vmem:[%s284 + $0x18] sm:$0xff]
      %v289 = vld [vmem:[%s284 + $0x20] sm:$0xff]
      %v290 = vld [vmem:[%s284 + $0x28] sm:$0xff]
      %v291 = vld [vmem:[%s284 + $0x30] sm:$0xff]
      %v292 = vld [vmem:[%s284 + $0x38] sm:$0xff]
      %v293 = vld [vmem:[%s284 + $0x40] sm:$0xff]
      %v294 = vld [vmem:[%s284 + $0x48] sm:$0xff]
      %v295 = vld [vmem:[%s284 + $0x50] sm:$0xff]
      %v296 = vld [vmem:[%s284 + $0x58] sm:$0xff]
      %v297 = vld [vmem:[%s284 + $0x60] sm:$0xff]
      %v298 = vld [vmem:[%s284 + $0x68] sm:$0xff]
      %v299 = vld [vmem:[%s284 + $0x70] sm:$0xff]
      %v300 = vld [vmem:[%s284 + $0x78] sm:$0xff]
      %v301 = vld [vmem:[%s284 + $0x80] sm:$0xff]
      %v302 = vld [vmem:[%s284 + $0x88] sm:$0xff]
      %v303 = vld [vmem:[%s284 + $0x90] sm:$0xff]
      %v304 = vld [vmem:[%s284 + $0x98] sm:$0xff]
      %v305 = vld [vmem:[%s284 + $0xa0] sm:$0xff]
      %v306 = vld [vmem:[%s284 + $0xa8] sm:$0xff]
      %v307 = vld [vmem:[%s284 + $0xb0] sm:$0xff]
      %v308 = vld [vmem:[%s284 + $0xb8] sm:$0xff]
      %v309 = vld [vmem:[%s284 + $0xc0] sm:$0xff]
      %v310 = vld [vmem:[%s284 + $0xc8] sm:$0xff]
      %v311 = vld [vmem:[%s284 + $0xd0] sm:$0xff]
      %v312 = vld [vmem:[%s284 + $0xd8] sm:$0xff]
      %v313 = vld [vmem:[%s284 + $0xe0] sm:$0xff]
      %v314 = vld [vmem:[%s284 + $0xe8] sm:$0xff]
      %v315 = vld [vmem:[%s284 + $0xf0] sm:$0xff]
      %v316 = vld [vmem:[%s284 + $0xf8] sm:$0xff]
      %s317 = smul.u32 %s262, 8
      %s318 = scalar_lea.vmem %s4, %s317
      %v319 = vld [vmem:[%s318] sm:$0x3f]
      %v320 = vadd.f32 %v267, %v268
      %v321 = vadd.f32 %v320, %v269
      %v322 = vadd.f32 %v321, %v270
      %v323 = vadd.f32 %v322, %v271
      %v324 = vadd.f32 %v323, %v272
      %v325 = vadd.f32 %v324, %v273
      %v326 = vadd.f32 %v325, %v274
      %v327 = vadd.f32 %v326, %v275
      %v328 = vadd.f32 %v327, %v276
      %v329 = vadd.f32 %v328, %v277
      %v330 = vadd.f32 %v329, %v278
      %v331 = vadd.f32 %v330, %v279
      %v332 = vadd.f32 %v331, %v280
      %v333 = vadd.f32 %v332, %v281
      %v334 = vadd.f32 %v333, %v282
      %v335 = vrot.slane %v334, 4
      %v336 = vadd.f32 %v334, %v335
      %v337 = vrot.slane %v336, 2
      %v338 = vadd.f32 %v336, %v337
      %v339 = vrot.slane %v338, 1
      %v340 = vadd.f32 %v338, %v339
      %v341 = vrcp.pop 128.0
      %v342 = vmul.f32 %v340, %v341
      %v343 = vmul.f32 %v267, %v267
      %v344 = vmul.f32 %v268, %v268
      %v345 = vmul.f32 %v269, %v269
      %v346 = vmul.f32 %v270, %v270
      %v347 = vmul.f32 %v271, %v271
      %v348 = vmul.f32 %v272, %v272
      %v349 = vmul.f32 %v273, %v273
      %v350 = vmul.f32 %v274, %v274
      %v351 = vmul.f32 %v275, %v275
      %v352 = vmul.f32 %v276, %v276
      %v353 = vmul.f32 %v277, %v277
      %v354 = vmul.f32 %v278, %v278
      %v355 = vmul.f32 %v279, %v279
      %v356 = vmul.f32 %v280, %v280
      %v357 = vmul.f32 %v281, %v281
      %v358 = vmul.f32 %v282, %v282
      %v359 = vadd.f32 %v343, %v344
      %v360 = vadd.f32 %v359, %v345
      %v361 = vadd.f32 %v360, %v346
      %v362 = vadd.f32 %v361, %v347
      %v363 = vadd.f32 %v362, %v348
      %v364 = vadd.f32 %v363, %v349
      %v365 = vadd.f32 %v364, %v350
      %v366 = vadd.f32 %v365, %v351
      %v367 = vadd.f32 %v366, %v352
      %v368 = vadd.f32 %v367, %v353
      %v369 = vadd.f32 %v368, %v354
      %v370 = vadd.f32 %v369, %v355
      %v371 = vadd.f32 %v370, %v356
      %v372 = vadd.f32 %v371, %v357
      %v373 = vadd.f32 %v372, %v358
      %v374 = vrot.slane %v373, 4
      %v375 = vadd.f32 %v373, %v374
      %v376 = vrot.slane %v375, 2
      %v377 = vadd.f32 %v375, %v376
      %v378 = vrot.slane %v377, 1
      %v379 = vadd.f32 %v377, %v378
      %v380 = vmul.f32 %v379, %v341
      %v381 = vmul.f32 %v342, %v342
      %v382 = vsub.f32 %v380, %v381
      %v383 = vmax.f32 %v382, 0.0
      %v384 = vadd.f32 %v383, 1e-05
      %v385 = vrsqrt.pop %v384
      %v386 = vmul.f32 %v319, %v385
      %v387 = vmul.f32 %v342, %v386
      %v389 = vrot.slane %v387, 7
      %v391 = vsub.f32 %v319, %v389
      %v392 = vlaneseq
      %v393 = vshrl.u32 %v392, 7
      %v394 = vsub.s32 0, %v393
      %v395 = vrot.slane %v386, %v394
      %v396 = vmul.f32 %v267, %v395
      %v397 = vmul.f32 %v268, %v395
      %v398 = vmul.f32 %v269, %v395
      %v399 = vmul.f32 %v270, %v395
      %v400 = vmul.f32 %v271, %v395
      %v401 = vmul.f32 %v272, %v395
      %v402 = vmul.f32 %v273, %v395
      %v403 = vmul.f32 %v274, %v395
      %v404 = vmul.f32 %v275, %v395
      %v405 = vmul.f32 %v276, %v395
      %v406 = vmul.f32 %v277, %v395
      %v407 = vmul.f32 %v278, %v395
      %v408 = vmul.f32 %v279, %v395
      %v409 = vmul.f32 %v280, %v395
      %v410 = vmul.f32 %v281, %v395
      %v411 = vmul.f32 %v282, %v395
      %v412 = vlaneseq
      %v413 = vshrl.u32 %v412, 7
      %v414 = vsub.s32 1, %v413
      %v415 = vrot.slane %v391, %v414
      %v416 = vadd.f32 %v396, %v415
      %v417 = vadd.f32 %v397, %v415
      %v418 = vadd.f32 %v398, %v415
      %v419 = vadd.f32 %v399, %v415
      %v420 = vadd.f32 %v400, %v415
      %v421 = vadd.f32 %v401, %v415
      %v422 = vadd.f32 %v402, %v415
      %v423 = vadd.f32 %v403, %v415
      %v424 = vadd.f32 %v404, %v415
      %v425 = vadd.f32 %v405, %v415
      %v426 = vadd.f32 %v406, %v415
      %v427 = vadd.f32 %v407, %v415
      %v428 = vadd.f32 %v408, %v415
      %v429 = vadd.f32 %v409, %v415
      %v430 = vadd.f32 %v410, %v415
      %v431 = vadd.f32 %v411, %v415
      %v432 = vmax.f32 %v416, 0.0
      %v433 = vmax.f32 %v417, 0.0
      %v434 = vmax.f32 %v418, 0.0
      %v435 = vmax.f32 %v419, 0.0
      %v436 = vmax.f32 %v420, 0.0
      %v437 = vmax.f32 %v421, 0.0
      %v438 = vmax.f32 %v422, 0.0
      %v439 = vmax.f32 %v423, 0.0
      %v440 = vmax.f32 %v424, 0.0
      %v441 = vmax.f32 %v425, 0.0
      %v442 = vmax.f32 %v426, 0.0
      %v443 = vmax.f32 %v427, 0.0
      %v444 = vmax.f32 %v428, 0.0
      %v445 = vmax.f32 %v429, 0.0
      %v446 = vmax.f32 %v430, 0.0
      %v447 = vmax.f32 %v431, 0.0
      %v448 = vlaneseq
      %v449 = vshrl.u32 %v448, 7
      %v450 = vsub.s32 2, %v449
      %v451 = vrot.slane %v319, %v450
      %452 = vmatprep.subr.mxu0 0.0
      %453 = vmatpush1.msra.mxu0 %v300
      %454 = vmatprep.subr.mxu0 0.0
      %455 = vmatpush1.msra.mxu0 %v299
      %456 = vmatprep.subr.mxu0 0.0
      %457 = vmatpush1.msra.mxu0 %v298
      %458 = vmatprep.subr.mxu0 0.0
      %459 = vmatpush1.msra.mxu0 %v297
      %460 = vmatprep.subr.mxu0 0.0
      %461 = vmatpush1.msra.mxu0 %v296
      %462 = vmatprep.subr.mxu0 0.0
      %463 = vmatpush1.msra.mxu0 %v295
      %464 = vmatprep.subr.mxu0 0.0
      %465 = vmatpush1.msra.mxu0 %v294
      %466 = vmatprep.subr.mxu0 0.0
      %467 = vmatpush1.msra.mxu0 %v293
      %468 = vmatprep.subr.mxu0 0.0
      %469 = vmatpush1.msra.mxu0 %v292
      %470 = vmatprep.subr.mxu0 0.0
      %471 = vmatpush1.msra.mxu0 %v291
      %472 = vmatprep.subr.mxu0 0.0
      %473 = vmatpush1.msra.mxu0 %v290
      %474 = vmatprep.subr.mxu0 0.0
      %475 = vmatpush1.msra.mxu0 %v289
      %476 = vmatprep.subr.mxu0 0.0
      %477 = vmatpush1.msra.mxu0 %v288
      %478 = vmatprep.subr.mxu0 0.0
      %479 = vmatpush1.msra.mxu0 %v287
      %480 = vmatprep.subr.mxu0 0.0
      %481 = vmatpush1.msra.mxu0 %v286
      %482 = vmatprep.subr.mxu0 0.0
      %483 = vmatpush1.msra.mxu0 %v285
      %484 = vmatprep.subr.mxu0 0.0
      %485 = vmatpush2.msra.mxu0 0.0
      %486 = vmatprep.subr.mxu0 0.0
      %487 = vmatpush2.msra.mxu0 0.0
      %488 = vmatprep.subr.mxu0 0.0
      %489 = vmatpush2.msra.mxu0 0.0
      %490 = vmatprep.subr.mxu0 0.0
      %491 = vmatpush2.msra.mxu0 0.0
      %492 = vmatprep.subr.mxu0 0.0
      %493 = vmatpush2.msra.mxu0 0.0
      %494 = vmatprep.subr.mxu0 0.0
      %495 = vmatpush2.msra.mxu0 0.0
      %496 = vmatprep.subr.mxu0 0.0
      %497 = vmatpush2.msra.mxu0 0.0
      %498 = vmatprep.subr.mxu0 0.0
      %499 = vmatpush2.msra.mxu0 0.0
      %500 = vmatprep.subr.mxu0 0.0
      %501 = vmatpush2.msra.mxu0 0.0
      %502 = vmatprep.subr.mxu0 0.0
      %503 = vmatpush2.msra.mxu0 0.0
      %504 = vmatprep.subr.mxu0 0.0
      %505 = vmatpush2.msra.mxu0 0.0
      %506 = vmatprep.subr.mxu0 0.0
      %507 = vmatpush2.msra.mxu0 0.0
      %508 = vmatprep.subr.mxu0 0.0
      %509 = vmatpush2.msra.mxu0 0.0
      %510 = vmatprep.subr.mxu0 0.0
      %511 = vmatpush2.msra.mxu0 0.0
      %512 = vmatprep.subr.mxu0 0.0
      %513 = vmatpush2.msra.mxu0 0.0
      %514 = vmatprep.subr.mxu0 0.0
      %515 = vmatpush2.msra.mxu0 0.0
      %516 = vmatprep.mubr.f32.mxu0 0.0
      %517 = vmatmul.mubr.f32.gmra.mxu0 %v432
      %v518 = vpop.f32.mrf.mxu0
      %v519 = vadd.f32 %v451, %v518
      %v520 = vpop.f32.mrf.mxu0
      %521 = vmatprep.mubr.f32.mxu0 0.0
      %522 = vmatmul.mubr.f32.gmra.mxu0 %v433
      %v523 = vpop.f32.mrf.mxu0
      %v524 = vadd.f32 %v451, %v523
      %v525 = vpop.f32.mrf.mxu0
      %526 = vmatprep.mubr.f32.mxu0 0.0
      %527 = vmatmul.mubr.f32.gmra.mxu0 %v434
      %v528 = vpop.f32.mrf.mxu0
      %v529 = vadd.f32 %v451, %v528
      %v530 = vpop.f32.mrf.mxu0
      %531 = vmatprep.mubr.f32.mxu0 0.0
      %532 = vmatmul.mubr.f32.gmra.mxu0 %v435
      %v533 = vpop.f32.mrf.mxu0
      %v534 = vadd.f32 %v451, %v533
      %v535 = vpop.f32.mrf.mxu0
      %536 = vmatprep.mubr.f32.mxu0 0.0
      %537 = vmatmul.mubr.f32.gmra.mxu0 %v436
      %v538 = vpop.f32.mrf.mxu0
      %v539 = vadd.f32 %v451, %v538
      %v540 = vpop.f32.mrf.mxu0
      %541 = vmatprep.mubr.f32.mxu0 0.0
      %542 = vmatmul.mubr.f32.gmra.mxu0 %v437
      %v543 = vpop.f32.mrf.mxu0
      %v544 = vadd.f32 %v451, %v543
      %v545 = vpop.f32.mrf.mxu0
      %546 = vmatprep.mubr.f32.mxu0 0.0
      %547 = vmatmul.mubr.f32.gmra.mxu0 %v438
      %v548 = vpop.f32.mrf.mxu0
      %v549 = vadd.f32 %v451, %v548
      %v550 = vpop.f32.mrf.mxu0
      %551 = vmatprep.mubr.f32.mxu0 0.0
      %552 = vmatmul.mubr.f32.gmra.mxu0 %v439
      %v553 = vpop.f32.mrf.mxu0
      %v554 = vadd.f32 %v451, %v553
      %v555 = vpop.f32.mrf.mxu0
      %556 = vmatprep.mubr.f32.mxu0 0.0
      %557 = vmatmul.mubr.f32.gmra.mxu0 %v440
      %v558 = vpop.f32.mrf.mxu0
      %v559 = vadd.f32 %v451, %v558
      %v560 = vpop.f32.mrf.mxu0
      %561 = vmatprep.mubr.f32.mxu0 0.0
      %562 = vmatmul.mubr.f32.gmra.mxu0 %v441
      %v563 = vpop.f32.mrf.mxu0
      %v564 = vadd.f32 %v451, %v563
      %v565 = vpop.f32.mrf.mxu0
      %566 = vmatprep.mubr.f32.mxu0 0.0
      %567 = vmatmul.mubr.f32.gmra.mxu0 %v442
      %v568 = vpop.f32.mrf.mxu0
      %v569 = vadd.f32 %v451, %v568
      %v570 = vpop.f32.mrf.mxu0
      %571 = vmatprep.mubr.f32.mxu0 0.0
      %572 = vmatmul.mubr.f32.gmra.mxu0 %v443
      %v573 = vpop.f32.mrf.mxu0
      %v574 = vadd.f32 %v451, %v573
      %v575 = vpop.f32.mrf.mxu0
      %576 = vmatprep.mubr.f32.mxu0 0.0
      %577 = vmatmul.mubr.f32.gmra.mxu0 %v444
      %v578 = vpop.f32.mrf.mxu0
      %v579 = vadd.f32 %v451, %v578
      %v580 = vpop.f32.mrf.mxu0
      %581 = vmatprep.mubr.f32.mxu0 0.0
      %582 = vmatmul.mubr.f32.gmra.mxu0 %v445
      %v583 = vpop.f32.mrf.mxu0
      %v584 = vadd.f32 %v451, %v583
      %v585 = vpop.f32.mrf.mxu0
      %586 = vmatprep.mubr.f32.mxu0 0.0
      %587 = vmatmul.mubr.f32.gmra.mxu0 %v446
      %v588 = vpop.f32.mrf.mxu0
      %v589 = vadd.f32 %v451, %v588
      %v590 = vpop.f32.mrf.mxu0
      %591 = vmatprep.mubr.f32.mxu0 0.0
      %592 = vmatmul.mubr.f32.gmra.mxu0 %v447
      %v593 = vpop.f32.mrf.mxu0
      %v594 = vadd.f32 %v451, %v593
      %v595 = vpop.f32.mrf.mxu0
      %596 = vdwg.mxu0
      %v597 = vadd.f32 %v519, %v524
      %v598 = vadd.f32 %v597, %v529
      %v599 = vadd.f32 %v598, %v534
      %v600 = vadd.f32 %v599, %v539
      %v601 = vadd.f32 %v600, %v544
      %v602 = vadd.f32 %v601, %v549
      %v603 = vadd.f32 %v602, %v554
      %v604 = vadd.f32 %v603, %v559
      %v605 = vadd.f32 %v604, %v564
      %v606 = vadd.f32 %v605, %v569
      %v607 = vadd.f32 %v606, %v574
      %v608 = vadd.f32 %v607, %v579
      %v609 = vadd.f32 %v608, %v584
      %v610 = vadd.f32 %v609, %v589
      %v611 = vadd.f32 %v610, %v594
      %v612 = vrot.slane %v611, 4
      %v613 = vadd.f32 %v611, %v612
      %v614 = vrot.slane %v613, 2
      %v615 = vadd.f32 %v613, %v614
      %v616 = vrot.slane %v615, 1
      %v617 = vadd.f32 %v615, %v616
      %v618 = vmul.f32 %v617, %v341
      %v619 = vmul.f32 %v519, %v519
      %v620 = vmul.f32 %v524, %v524
      %v621 = vmul.f32 %v529, %v529
      %v622 = vmul.f32 %v534, %v534
      %v623 = vmul.f32 %v539, %v539
      %v624 = vmul.f32 %v544, %v544
      %v625 = vmul.f32 %v549, %v549
      %v626 = vmul.f32 %v554, %v554
      %v627 = vmul.f32 %v559, %v559
      %v628 = vmul.f32 %v564, %v564
      %v629 = vmul.f32 %v569, %v569
      %v630 = vmul.f32 %v574, %v574
      %v631 = vmul.f32 %v579, %v579
      %v632 = vmul.f32 %v584, %v584
      %v633 = vmul.f32 %v589, %v589
      %v634 = vmul.f32 %v594, %v594
      %v635 = vadd.f32 %v619, %v620
      %v636 = vadd.f32 %v635, %v621
      %v637 = vadd.f32 %v636, %v622
      %v638 = vadd.f32 %v637, %v623
      %v639 = vadd.f32 %v638, %v624
      %v640 = vadd.f32 %v639, %v625
      %v641 = vadd.f32 %v640, %v626
      %v642 = vadd.f32 %v641, %v627
      %v643 = vadd.f32 %v642, %v628
      %v644 = vadd.f32 %v643, %v629
      %v645 = vadd.f32 %v644, %v630
      %v646 = vadd.f32 %v645, %v631
      %v647 = vadd.f32 %v646, %v632
      %v648 = vadd.f32 %v647, %v633
      %v649 = vadd.f32 %v648, %v634
      %v650 = vrot.slane %v649, 4
      %v651 = vadd.f32 %v649, %v650
      %v652 = vrot.slane %v651, 2
      %v653 = vadd.f32 %v651, %v652
      %v654 = vrot.slane %v653, 1
      %v655 = vadd.f32 %v653, %v654
      %v656 = vmul.f32 %v655, %v341
      %v657 = vmul.f32 %v618, %v618
      %v658 = vsub.f32 %v656, %v657
      %v659 = vmax.f32 %v658, 0.0
      %v660 = vadd.f32 %v659, 1e-05
      %v661 = vrsqrt.pop %v660
      %v662 = vmul.f32 %v319, %v661
      %v663 = vmul.f32 %v618, %v662
      %v665 = vrot.slane %v663, 7
      %v667 = vsub.f32 %v319, %v665
      %v668 = vlaneseq
      %v669 = vshrl.u32 %v668, 7
      %v670 = vsub.s32 3, %v669
      %v671 = vrot.slane %v662, %v670
      %v672 = vmul.f32 %v519, %v671
      %v673 = vmul.f32 %v524, %v671
      %v674 = vmul.f32 %v529, %v671
      %v675 = vmul.f32 %v534, %v671
      %v676 = vmul.f32 %v539, %v671
      %v677 = vmul.f32 %v544, %v671
      %v678 = vmul.f32 %v549, %v671
      %v679 = vmul.f32 %v554, %v671
      %v680 = vmul.f32 %v559, %v671
      %v681 = vmul.f32 %v564, %v671
      %v682 = vmul.f32 %v569, %v671
      %v683 = vmul.f32 %v574, %v671
      %v684 = vmul.f32 %v579, %v671
      %v685 = vmul.f32 %v584, %v671
      %v686 = vmul.f32 %v589, %v671
      %v687 = vmul.f32 %v594, %v671
      %v688 = vlaneseq
      %v689 = vshrl.u32 %v688, 7
      %v690 = vsub.s32 4, %v689
      %v691 = vrot.slane %v667, %v690
      %v692 = vadd.f32 %v672, %v691
      %v693 = vadd.f32 %v673, %v691
      %v694 = vadd.f32 %v674, %v691
      %v695 = vadd.f32 %v675, %v691
      %v696 = vadd.f32 %v676, %v691
      %v697 = vadd.f32 %v677, %v691
      %v698 = vadd.f32 %v678, %v691
      %v699 = vadd.f32 %v679, %v691
      %v700 = vadd.f32 %v680, %v691
      %v701 = vadd.f32 %v681, %v691
      %v702 = vadd.f32 %v682, %v691
      %v703 = vadd.f32 %v683, %v691
      %v704 = vadd.f32 %v684, %v691
      %v705 = vadd.f32 %v685, %v691
      %v706 = vadd.f32 %v686, %v691
      %v707 = vadd.f32 %v687, %v691
      %v708 = vmax.f32 %v692, 0.0
      %v709 = vmax.f32 %v693, 0.0
      %v710 = vmax.f32 %v694, 0.0
      %v711 = vmax.f32 %v695, 0.0
      %v712 = vmax.f32 %v696, 0.0
      %v713 = vmax.f32 %v697, 0.0
      %v714 = vmax.f32 %v698, 0.0
      %v715 = vmax.f32 %v699, 0.0
      %v716 = vmax.f32 %v700, 0.0
      %v717 = vmax.f32 %v701, 0.0
      %v718 = vmax.f32 %v702, 0.0
      %v719 = vmax.f32 %v703, 0.0
      %v720 = vmax.f32 %v704, 0.0
      %v721 = vmax.f32 %v705, 0.0
      %v722 = vmax.f32 %v706, 0.0
      %v723 = vmax.f32 %v707, 0.0
      %v724 = vlaneseq
      %v725 = vshrl.u32 %v724, 7
      %v726 = vsub.s32 5, %v725
      %v727 = vrot.slane %v319, %v726
      %728 = vmatprep.subr.mxu0 0.0
      %729 = vmatpush1.msra.mxu0 %v316
      %730 = vmatprep.subr.mxu0 0.0
      %731 = vmatpush1.msra.mxu0 %v315
      %732 = vmatprep.subr.mxu0 0.0
      %733 = vmatpush1.msra.mxu0 %v314
      %734 = vmatprep.subr.mxu0 0.0
      %735 = vmatpush1.msra.mxu0 %v313
      %736 = vmatprep.subr.mxu0 0.0
      %737 = vmatpush1.msra.mxu0 %v312
      %738 = vmatprep.subr.mxu0 0.0
      %739 = vmatpush1.msra.mxu0 %v311
      %740 = vmatprep.subr.mxu0 0.0
      %741 = vmatpush1.msra.mxu0 %v310
      %742 = vmatprep.subr.mxu0 0.0
      %743 = vmatpush1.msra.mxu0 %v309
      %744 = vmatprep.subr.mxu0 0.0
      %745 = vmatpush1.msra.mxu0 %v308
      %746 = vmatprep.subr.mxu0 0.0
      %747 = vmatpush1.msra.mxu0 %v307
      %748 = vmatprep.subr.mxu0 0.0
      %749 = vmatpush1.msra.mxu0 %v306
      %750 = vmatprep.subr.mxu0 0.0
      %751 = vmatpush1.msra.mxu0 %v305
      %752 = vmatprep.subr.mxu0 0.0
      %753 = vmatpush1.msra.mxu0 %v304
      %754 = vmatprep.subr.mxu0 0.0
      %755 = vmatpush1.msra.mxu0 %v303
      %756 = vmatprep.subr.mxu0 0.0
      %757 = vmatpush1.msra.mxu0 %v302
      %758 = vmatprep.subr.mxu0 0.0
      %759 = vmatpush1.msra.mxu0 %v301
      %760 = vmatprep.subr.mxu0 0.0
      %761 = vmatpush2.msra.mxu0 0.0
      %762 = vmatprep.subr.mxu0 0.0
      %763 = vmatpush2.msra.mxu0 0.0
      %764 = vmatprep.subr.mxu0 0.0
      %765 = vmatpush2.msra.mxu0 0.0
      %766 = vmatprep.subr.mxu0 0.0
      %767 = vmatpush2.msra.mxu0 0.0
      %768 = vmatprep.subr.mxu0 0.0
      %769 = vmatpush2.msra.mxu0 0.0
      %770 = vmatprep.subr.mxu0 0.0
      %771 = vmatpush2.msra.mxu0 0.0
      %772 = vmatprep.subr.mxu0 0.0
      %773 = vmatpush2.msra.mxu0 0.0
      %774 = vmatprep.subr.mxu0 0.0
      %775 = vmatpush2.msra.mxu0 0.0
      %776 = vmatprep.subr.mxu0 0.0
      %777 = vmatpush2.msra.mxu0 0.0
      %778 = vmatprep.subr.mxu0 0.0
      %779 = vmatpush2.msra.mxu0 0.0
      %780 = vmatprep.subr.mxu0 0.0
      %781 = vmatpush2.msra.mxu0 0.0
      %782 = vmatprep.subr.mxu0 0.0
      %783 = vmatpush2.msra.mxu0 0.0
      %784 = vmatprep.subr.mxu0 0.0
      %785 = vmatpush2.msra.mxu0 0.0
      %786 = vmatprep.subr.mxu0 0.0
      %787 = vmatpush2.msra.mxu0 0.0
      %788 = vmatprep.subr.mxu0 0.0
      %789 = vmatpush2.msra.mxu0 0.0
      %790 = vmatprep.subr.mxu0 0.0
      %791 = vmatpush2.msra.mxu0 0.0
      %792 = vmatprep.mubr.f32.mxu0 0.0
      %793 = vmatmul.mubr.f32.gmra.mxu0 %v708
      %v794 = vpop.f32.mrf.mxu0
      %v795 = vadd.f32 %v727, %v794
      %v796 = vpop.f32.mrf.mxu0
      %797 = vmatprep.mubr.f32.mxu0 0.0
      %798 = vmatmul.mubr.f32.gmra.mxu0 %v709
      %v799 = vpop.f32.mrf.mxu0
      %v800 = vadd.f32 %v727, %v799
      %v801 = vpop.f32.mrf.mxu0
      %802 = vmatprep.mubr.f32.mxu0 0.0
      %803 = vmatmul.mubr.f32.gmra.mxu0 %v710
      %v804 = vpop.f32.mrf.mxu0
      %v805 = vadd.f32 %v727, %v804
      %v806 = vpop.f32.mrf.mxu0
      %807 = vmatprep.mubr.f32.mxu0 0.0
      %808 = vmatmul.mubr.f32.gmra.mxu0 %v711
      %v809 = vpop.f32.mrf.mxu0
      %v810 = vadd.f32 %v727, %v809
      %v811 = vpop.f32.mrf.mxu0
      %812 = vmatprep.mubr.f32.mxu0 0.0
      %813 = vmatmul.mubr.f32.gmra.mxu0 %v712
      %v814 = vpop.f32.mrf.mxu0
      %v815 = vadd.f32 %v727, %v814
      %v816 = vpop.f32.mrf.mxu0
      %817 = vmatprep.mubr.f32.mxu0 0.0
      %818 = vmatmul.mubr.f32.gmra.mxu0 %v713
      %v819 = vpop.f32.mrf.mxu0
      %v820 = vadd.f32 %v727, %v819
      %v821 = vpop.f32.mrf.mxu0
      %822 = vmatprep.mubr.f32.mxu0 0.0
      %823 = vmatmul.mubr.f32.gmra.mxu0 %v714
      %v824 = vpop.f32.mrf.mxu0
      %v825 = vadd.f32 %v727, %v824
      %v826 = vpop.f32.mrf.mxu0
      %827 = vmatprep.mubr.f32.mxu0 0.0
      %828 = vmatmul.mubr.f32.gmra.mxu0 %v715
      %v829 = vpop.f32.mrf.mxu0
      %v830 = vadd.f32 %v727, %v829
      %v831 = vpop.f32.mrf.mxu0
      %832 = vmatprep.mubr.f32.mxu0 0.0
      %833 = vmatmul.mubr.f32.gmra.mxu0 %v716
      %v834 = vpop.f32.mrf.mxu0
      %v835 = vadd.f32 %v727, %v834
      %v836 = vpop.f32.mrf.mxu0
      %837 = vmatprep.mubr.f32.mxu0 0.0
      %838 = vmatmul.mubr.f32.gmra.mxu0 %v717
      %v839 = vpop.f32.mrf.mxu0
      %v840 = vadd.f32 %v727, %v839
      %v841 = vpop.f32.mrf.mxu0
      %842 = vmatprep.mubr.f32.mxu0 0.0
      %843 = vmatmul.mubr.f32.gmra.mxu0 %v718
      %v844 = vpop.f32.mrf.mxu0
      %v845 = vadd.f32 %v727, %v844
      %v846 = vpop.f32.mrf.mxu0
      %847 = vmatprep.mubr.f32.mxu0 0.0
      %848 = vmatmul.mubr.f32.gmra.mxu0 %v719
      %v849 = vpop.f32.mrf.mxu0
      %v850 = vadd.f32 %v727, %v849
      %v851 = vpop.f32.mrf.mxu0
      %852 = vmatprep.mubr.f32.mxu0 0.0
      %853 = vmatmul.mubr.f32.gmra.mxu0 %v720
      %v854 = vpop.f32.mrf.mxu0
      %v855 = vadd.f32 %v727, %v854
      %v856 = vpop.f32.mrf.mxu0
      %857 = vmatprep.mubr.f32.mxu0 0.0
      %858 = vmatmul.mubr.f32.gmra.mxu0 %v721
      %v859 = vpop.f32.mrf.mxu0
      %v860 = vadd.f32 %v727, %v859
      %v861 = vpop.f32.mrf.mxu0
      %862 = vmatprep.mubr.f32.mxu0 0.0
      %863 = vmatmul.mubr.f32.gmra.mxu0 %v722
      %v864 = vpop.f32.mrf.mxu0
      %v865 = vadd.f32 %v727, %v864
      %v866 = vpop.f32.mrf.mxu0
      %867 = vmatprep.mubr.f32.mxu0 0.0
      %868 = vmatmul.mubr.f32.gmra.mxu0 %v723
      %v869 = vpop.f32.mrf.mxu0
      %v870 = vadd.f32 %v727, %v869
      %v871 = vpop.f32.mrf.mxu0
      %872 = vdwg.mxu0
      %v873 = vadd.f32 %v267, %v795
      %v874 = vadd.f32 %v268, %v800
      %v875 = vadd.f32 %v269, %v805
      %v876 = vadd.f32 %v270, %v810
      %v877 = vadd.f32 %v271, %v815
      %v878 = vadd.f32 %v272, %v820
      %v879 = vadd.f32 %v273, %v825
      %v880 = vadd.f32 %v274, %v830
      %v881 = vadd.f32 %v275, %v835
      %v882 = vadd.f32 %v276, %v840
      %v883 = vadd.f32 %v277, %v845
      %v884 = vadd.f32 %v278, %v850
      %v885 = vadd.f32 %v279, %v855
      %v886 = vadd.f32 %v280, %v860
      %v887 = vadd.f32 %v281, %v865
      %v888 = vadd.f32 %v282, %v870
    $region38: #{tpu_custom_call.1} parent=1 // loop_footer
      %s266 = sadd.s32 1, %s262
    $region39: #{tpu_custom_call.1} parent=1 // loop_footer_branch
      %261 = sbr.rel target = $region35
    $region40: #{tpu_custom_call.1} parent=1 // loop_exit
      _
    %v889 = vadd.f32 %v267, %v268
    %v890 = vadd.f32 %v889, %v269
    %v891 = vadd.f32 %v890, %v270
    %v892 = vadd.f32 %v891, %v271
    %v893 = vadd.f32 %v892, %v272
    %v894 = vadd.f32 %v893, %v273
    %v895 = vadd.f32 %v894, %v274
    %v896 = vadd.f32 %v895, %v275
    %v897 = vadd.f32 %v896, %v276
    %v898 = vadd.f32 %v897, %v277
    %v899 = vadd.f32 %v898, %v278
    %v900 = vadd.f32 %v899, %v279
    %v901 = vadd.f32 %v900, %v280
    %v902 = vadd.f32 %v901, %v281
    %v903 = vadd.f32 %v902, %v282
    %v904 = vrot.slane %v903, 4
    %v905 = vadd.f32 %v903, %v904
    %v906 = vrot.slane %v905, 2
    %v907 = vadd.f32 %v905, %v906
    %v908 = vrot.slane %v907, 1
    %v909 = vadd.f32 %v907, %v908
    %v910 = vrcp.pop 128.0
    %v911 = vmul.f32 %v909, %v910
    %v912 = vmul.f32 %v267, %v267
    %v913 = vmul.f32 %v268, %v268
    %v914 = vmul.f32 %v269, %v269
    %v915 = vmul.f32 %v270, %v270
    %v916 = vmul.f32 %v271, %v271
    %v917 = vmul.f32 %v272, %v272
    %v918 = vmul.f32 %v273, %v273
    %v919 = vmul.f32 %v274, %v274
    %v920 = vmul.f32 %v275, %v275
    %v921 = vmul.f32 %v276, %v276
    %v922 = vmul.f32 %v277, %v277
    %v923 = vmul.f32 %v278, %v278
    %v924 = vmul.f32 %v279, %v279
    %v925 = vmul.f32 %v280, %v280
    %v926 = vmul.f32 %v281, %v281
    %v927 = vmul.f32 %v282, %v282
    %v928 = vadd.f32 %v912, %v913
    %v929 = vadd.f32 %v928, %v914
    %v930 = vadd.f32 %v929, %v915
    %v931 = vadd.f32 %v930, %v916
    %v932 = vadd.f32 %v931, %v917
    %v933 = vadd.f32 %v932, %v918
    %v934 = vadd.f32 %v933, %v919
    %v935 = vadd.f32 %v934, %v920
    %v936 = vadd.f32 %v935, %v921
    %v937 = vadd.f32 %v936, %v922
    %v938 = vadd.f32 %v937, %v923
    %v939 = vadd.f32 %v938, %v924
    %v940 = vadd.f32 %v939, %v925
    %v941 = vadd.f32 %v940, %v926
    %v942 = vadd.f32 %v941, %v927
    %v943 = vrot.slane %v942, 4
    %v944 = vadd.f32 %v942, %v943
    %v945 = vrot.slane %v944, 2
    %v946 = vadd.f32 %v944, %v945
    %v947 = vrot.slane %v946, 1
    %v948 = vadd.f32 %v946, %v947
    %v949 = vmul.f32 %v948, %v910
    %v950 = vmul.f32 %v911, %v911
    %v951 = vsub.f32 %v949, %v950
    %v952 = vmax.f32 %v951, 0.0
    %v953 = vadd.f32 %v952, 1e-05
    %v954 = vrsqrt.pop %v953
    %v955 = vmul.f32 %v43, %v954
    %v956 = vmul.f32 %v911, %v955
    %v958 = vrot.slane %v956, 7
    %v960 = vsub.f32 %v43, %v958
    %v961 = vlaneseq
    %v962 = vshrl.u32 %v961, 7
    %v963 = vsub.s32 1, %v962
    %v964 = vrot.slane %v955, %v963
    %v965 = vmul.f32 %v267, %v964
    %v966 = vmul.f32 %v268, %v964
    %v967 = vmul.f32 %v269, %v964
    %v968 = vmul.f32 %v270, %v964
    %v969 = vmul.f32 %v271, %v964
    %v970 = vmul.f32 %v272, %v964
    %v971 = vmul.f32 %v273, %v964
    %v972 = vmul.f32 %v274, %v964
    %v973 = vmul.f32 %v275, %v964
    %v974 = vmul.f32 %v276, %v964
    %v975 = vmul.f32 %v277, %v964
    %v976 = vmul.f32 %v278, %v964
    %v977 = vmul.f32 %v279, %v964
    %v978 = vmul.f32 %v280, %v964
    %v979 = vmul.f32 %v281, %v964
    %v980 = vmul.f32 %v282, %v964
    %v981 = vlaneseq
    %v982 = vshrl.u32 %v981, 7
    %v983 = vsub.s32 2, %v982
    %v984 = vrot.slane %v960, %v983
    %v985 = vadd.f32 %v965, %v984
    %v986 = vadd.f32 %v966, %v984
    %v987 = vadd.f32 %v967, %v984
    %v988 = vadd.f32 %v968, %v984
    %v989 = vadd.f32 %v969, %v984
    %v990 = vadd.f32 %v970, %v984
    %v991 = vadd.f32 %v971, %v984
    %v992 = vadd.f32 %v972, %v984
    %v993 = vadd.f32 %v973, %v984
    %v994 = vadd.f32 %v974, %v984
    %v995 = vadd.f32 %v975, %v984
    %v996 = vadd.f32 %v976, %v984
    %v997 = vadd.f32 %v977, %v984
    %v998 = vadd.f32 %v978, %v984
    %v999 = vadd.f32 %v979, %v984
    %v1000 = vadd.f32 %v980, %v984
    %v1001 = vmax.f32 %v985, 0.0
    %v1002 = vmax.f32 %v986, 0.0
    %v1003 = vmax.f32 %v987, 0.0
    %v1004 = vmax.f32 %v988, 0.0
    %v1005 = vmax.f32 %v989, 0.0
    %v1006 = vmax.f32 %v990, 0.0
    %v1007 = vmax.f32 %v991, 0.0
    %v1008 = vmax.f32 %v992, 0.0
    %v1009 = vmax.f32 %v993, 0.0
    %v1010 = vmax.f32 %v994, 0.0
    %v1011 = vmax.f32 %v995, 0.0
    %v1012 = vmax.f32 %v996, 0.0
    %v1013 = vmax.f32 %v997, 0.0
    %v1014 = vmax.f32 %v998, 0.0
    %v1015 = vmax.f32 %v999, 0.0
    %v1016 = vmax.f32 %v1000, 0.0
    %v1017 = vld [vmem:[%s5] sm:$0x1]
    %v1018 = vld [vmem:[#allocation2] sm:$0x1]
    %1020 = vset.pattern.permute.xlu0 0
    %1021 = vperm.xlu0 %1020, %v1018
    %v1022 = vpop.permute.xlu0 %1021
    %v1024 = vlaneseq
    %v1025 = vshrl.u32 %v1024, 7
    %v1026 = vsub.s32 0, %v1025
    %v1027 = vrot.slane %v1022, %v1026
    %1028 = vmatprep.subr.mxu0 0.0
    %1029 = vmatpush1.xpose.msra.mxu0 %v1016
    %1030 = vmatprep.subr.mxu0 0.0
    %1031 = vmatpush1.xpose.msra.mxu0 %v1015
    %1032 = vmatprep.subr.mxu0 0.0
    %1033 = vmatpush1.xpose.msra.mxu0 %v1014
    %1034 = vmatprep.subr.mxu0 0.0
    %1035 = vmatpush1.xpose.msra.mxu0 %v1013
    %1036 = vmatprep.subr.mxu0 0.0
    %1037 = vmatpush1.xpose.msra.mxu0 %v1012
    %1038 = vmatprep.subr.mxu0 0.0
    %1039 = vmatpush1.xpose.msra.mxu0 %v1011
    %1040 = vmatprep.subr.mxu0 0.0
    %1041 = vmatpush1.xpose.msra.mxu0 %v1010
    %1042 = vmatprep.subr.mxu0 0.0
    %1043 = vmatpush1.xpose.msra.mxu0 %v1009
    %1044 = vmatprep.subr.mxu0 0.0
    %1045 = vmatpush1.xpose.msra.mxu0 %v1008
    %1046 = vmatprep.subr.mxu0 0.0
    %1047 = vmatpush1.xpose.msra.mxu0 %v1007
    %1048 = vmatprep.subr.mxu0 0.0
    %1049 = vmatpush1.xpose.msra.mxu0 %v1006
    %1050 = vmatprep.subr.mxu0 0.0
    %1051 = vmatpush1.xpose.msra.mxu0 %v1005
    %1052 = vmatprep.subr.mxu0 0.0
    %1053 = vmatpush1.xpose.msra.mxu0 %v1004
    %1054 = vmatprep.subr.mxu0 0.0
    %1055 = vmatpush1.xpose.msra.mxu0 %v1003
    %1056 = vmatprep.subr.mxu0 0.0
    %1057 = vmatpush1.xpose.msra.mxu0 %v1002
    %1058 = vmatprep.subr.mxu0 0.0
    %1059 = vmatpush1.xpose.msra.mxu0 %v1001
    %1060 = vmatprep.subr.mxu0 0.0
    %1061 = vmatpush2.xpose.msra.mxu0 0.0
    %1062 = vmatprep.subr.mxu0 0.0
    %1063 = vmatpush2.xpose.msra.mxu0 0.0
    %1064 = vmatprep.subr.mxu0 0.0
    %1065 = vmatpush2.xpose.msra.mxu0 0.0
    %1066 = vmatprep.subr.mxu0 0.0
    %1067 = vmatpush2.xpose.msra.mxu0 0.0
    %1068 = vmatprep.subr.mxu0 0.0
    %1069 = vmatpush2.xpose.msra.mxu0 0.0
    %1070 = vmatprep.subr.mxu0 0.0
    %1071 = vmatpush2.xpose.msra.mxu0 0.0
    %1072 = vmatprep.subr.mxu0 0.0
    %1073 = vmatpush2.xpose.msra.mxu0 0.0
    %1074 = vmatprep.subr.mxu0 0.0
    %1075 = vmatpush2.xpose.msra.mxu0 0.0
    %1076 = vmatprep.subr.mxu0 0.0
    %1077 = vmatpush2.xpose.msra.mxu0 0.0
    %1078 = vmatprep.subr.mxu0 0.0
    %1079 = vmatpush2.xpose.msra.mxu0 0.0
    %1080 = vmatprep.subr.mxu0 0.0
    %1081 = vmatpush2.xpose.msra.mxu0 0.0
    %1082 = vmatprep.subr.mxu0 0.0
    %1083 = vmatpush2.xpose.msra.mxu0 0.0
    %1084 = vmatprep.subr.mxu0 0.0
    %1085 = vmatpush2.xpose.msra.mxu0 0.0
    %1086 = vmatprep.subr.mxu0 0.0
    %1087 = vmatpush2.xpose.msra.mxu0 0.0
    %1088 = vmatprep.subr.mxu0 0.0
    %1089 = vmatpush2.xpose.msra.mxu0 0.0
    %1090 = vmatprep.subr.mxu0 0.0
    %1091 = vmatpush2.xpose.msra.mxu0 0.0
    %1092 = vmatprep.mubr.f32.mxu0 0.0
    %1093 = vmatmul.mubr.f32.gmra.mxu0 %v1017
    %v1094 = vpop.f32.mrf.mxu0
    %v1095 = vadd.f32 %v1027, %v1094
    %v1096 = vpop.f32.mrf.mxu0
    %1097 = vdwg.mxu0
    %1098 = vst [vmem:[#allocation6] sm:$0x1] %v1095
    // Predicated region
    $region41: #{tpu_custom_call.1} parent=1 // pred_check
      _
    $region42: #{tpu_custom_call.1} parent=1 // pred_check_branch
      %1100 = sbr.rel (0) target = $region44
    $region43: #{tpu_custom_call.1} parent=1 // pred_region
      %s1102 = ssub.s32 16, 16
      %1103 = vsyncadd [#allocation5], %s1102
      %s1105 = sshll.u32 [#allocation6], 4
      %s1106 = int_to_ptr.vmem [resolvable:$true] %s1105
      %1108 = dma.vmem_to_hbm [thread:$0]  %s1106, 16, %s7, [#allocation5]
    $region44: #{tpu_custom_call.1} parent=1 // pred_fallthru
      _
    // Predicated region
    $region45: #{tpu_custom_call.1} parent=1 // pred_check
      _
    $region46: #{tpu_custom_call.1} parent=1 // pred_check_branch
      %1110 = sbr.rel (0) target = $region48
    $region47: #{tpu_custom_call.1} parent=1 // pred_region
      %1111 = dma.done [#allocation5], 16
    $region48: #{tpu_custom_call.1} parent=1 // pred_fallthru
      _
    %1112 = vsyncpa [#allocation4], 1
    %1113 = vsyncpa [#allocation5], 1

</llo_original>
